<compile_context>
chip_gen: v6e
topology: v6e:2x2x1
jax: 0.10.0
libtpu: 0.0.40
codegen_flags: <defaults>
</compile_context>

<pallas_src>
import functools
from typing import NamedTuple

import jax
import jax.numpy as jnp
from jax.experimental import pallas as pl
from jax.experimental.pallas import tpu as pltpu

_NEG_BIG = -1e30  # finite "minus infinity" for masked softmax lanes


def _round_up(x: int, m: int) -> int:
    return ((x + m - 1) // m) * m


def _default_num_batch_tiles() -> int:
    """1 grid step on single-TC chips (v5e/v6e), 2 on dual-TC chips (v7x)."""
    try:
        kind = jax.devices()[0].device_kind.lower()
    except Exception:  # pragma: no cover - conservative fallback
        return 1
    if ("v7" in kind) or ("7x" in kind):
        return 2
    return 1


class PolicyParams(NamedTuple):
    """Pre-cast (bf16) weights and f32 biases; W3/b3 lane-padded to 128-multiple."""
    w1: jax.Array  # [in_dim, fc1]  bf16
    b1: jax.Array  # [1, fc1]       f32
    w2: jax.Array  # [fc1, fc2]     bf16
    b2: jax.Array  # [1, fc2]       f32
    w3: jax.Array  # [fc2, n_out]   bf16 (n_out = round_up(n_actions, 128))
    b3: jax.Array  # [1, n_out]     f32


def prepare_params(w1_t, b1, w2_t, b2, w3_t, b3) -> PolicyParams:
    """One-time weight preparation (hoisted out of the per-call forward).

    Weights must already be transposed to [in, out] (PyTorch stores [out, in]);
    biases as [1, out].
    """
    n_actions = w3_t.shape[1]
    n_out = _round_up(max(n_actions, 128), 128)
    w3_p = jnp.pad(w3_t, ((0, 0), (0, n_out - n_actions)))
    b3_p = jnp.pad(b3, ((0, 0), (0, n_out - n_actions)))
    return PolicyParams(
        w1=w1_t.astype(jnp.bfloat16),
        b1=b1.astype(jnp.float32),
        w2=w2_t.astype(jnp.bfloat16),
        b2=b2.astype(jnp.float32),
        w3=w3_p.astype(jnp.bfloat16),
        b3=b3_p.astype(jnp.float32),
    )


def _policy_mlp_kernel(x_ref, w1_ref, b1_ref, w2_ref, b2_ref, w3_ref, b3_ref,
                       o_ref, *, apply_softmax, n_valid):
    """One batch tile: relu(relu(x@W1+b1)@W2+b2)@W3+b3 (+ optional softmax).

    x / W* are bf16 (MXU-native), accumulation + bias + ReLU in f32.
    Weights are the same VMEM-resident block for every grid step.
    """
    x = x_ref[...]                                                  # bf16 [TB, in]

    h1 = jnp.dot(x, w1_ref[...], preferred_element_type=jnp.float32)
    h1 = jnp.maximum(h1 + b1_ref[...], 0.0)                         # f32

    h2 = jnp.dot(h1.astype(jnp.bfloat16), w2_ref[...],
                 preferred_element_type=jnp.float32)
    h2 = jnp.maximum(h2 + b2_ref[...], 0.0)                         # f32

    out = jnp.dot(h2.astype(jnp.bfloat16), w3_ref[...],
                  preferred_element_type=jnp.float32)
    out = out + b3_ref[...]                                         # f32 [TB, n_out]

    if apply_softmax:
        # Fused softmax epilogue (EUP exp + lane reduce): mask padded lanes first.
        lane = jax.lax.broadcasted_iota(jnp.int32, out.shape, 1)
        out = jnp.where(lane < n_valid, out, _NEG_BIG)
        m = jnp.max(out, axis=-1, keepdims=True)
        e = jnp.exp(out - m)
        denom = jnp.sum(e, axis=-1, keepdims=True)
        out = e * pl.reciprocal(denom, approx=True)

    o_ref[...] = out.astype(o_ref.dtype)                            # lane-dense bf16 store


@functools.partial(
    jax.jit, static_argnames=("n_actions", "num_batch_tiles", "apply_softmax"))
def policy_forward(x, params: PolicyParams, *, n_actions,
                   num_batch_tiles=None, apply_softmax=False):
    """Fused MLP forward.

    Args:
      x:       [B, in_dim] float32 states.
      params:  PolicyParams from prepare_params() (pre-cast / pre-padded).
      n_actions: true number of actions (static).
      num_batch_tiles: grid steps over the batch (static). None -> 1 on
        single-TC chips, 2 on dual-TC (v7x).
      apply_softmax: if True, return action probabilities instead of logits.
    Returns:
      [B, n_actions] float32 logits (or probabilities).
    """
    B, in_dim = x.shape
    fc1 = params.w1.shape[1]
    fc2 = params.w2.shape[1]
    n_out = params.w3.shape[1]       # already a multiple of 128

    # --- batch tiling (all static Python at trace time) ---
    nt = num_batch_tiles if num_batch_tiles is not None else _default_num_batch_tiles()
    nt = max(1, int(nt))
    tb = _round_up(max(pl.cdiv(B, nt), 16), 16)   # bf16 sublane packing: >=16, x16
    if nt > 1 and tb >= 256:
        tb = _round_up(tb, 256)                   # align M to the MXU when tiling
    max_tb = 8192                                 # keep per-step VMEM tiny even for huge rollouts
    if tb > max_tb:
        tb = max_tb
        nt = pl.cdiv(B, tb)
    b_pad = tb * nt
    if b_pad != B:
        x = jnp.pad(x, ((0, b_pad - B), (0, 0)))
    xb = x.astype(jnp.bfloat16)

    kernel = functools.partial(_policy_mlp_kernel,
                               apply_softmax=apply_softmax, n_valid=n_actions)

    # Weights/biases: constant index_map -> VMEM-resident across all grid steps.
    resident = lambda shape: pl.BlockSpec(shape, lambda i: (0, 0))

    out_padded = pl.pallas_call(
        kernel,
        out_shape=jax.ShapeDtypeStruct((b_pad, n_out), jnp.bfloat16),
        grid=(nt,),
        in_specs=[
            pl.BlockSpec((tb, in_dim), lambda i: (i, 0)),   # x tile (pipelined)
            resident((in_dim, fc1)),                        # W1
            resident((1, fc1)),                             # b1
            resident((fc1, fc2)),                           # W2
            resident((1, fc2)),                             # b2
            resident((fc2, n_out)),                         # W3 (lane-padded)
            resident((1, n_out)),                           # b3
        ],
        out_specs=pl.BlockSpec((tb, n_out), lambda i: (i, 0)),
        compiler_params=pltpu.CompilerParams(
            dimension_semantics=("parallel",)),
    )(xb, params.w1, params.b1, params.w2, params.b2, params.w3, params.b3)

    # Downstream consumers that can take the padded bf16 buffer directly should
    # do so; this slice+cast only touches B x n_actions elements.
    return out_padded[:B, :n_actions].astype(jnp.float32)


def _init_linear(key, in_dim, out_dim):
    """PyTorch nn.Linear init: U(-1/sqrt(in), 1/sqrt(in)); weight pre-transposed."""
    kw, kb = jax.random.split(key)
    bound = 1.0 / jnp.sqrt(jnp.float32(in_dim))
    w_t = jax.random.uniform(kw, (in_dim, out_dim), jnp.float32, -bound, bound)
    b = jax.random.uniform(kb, (1, out_dim), jnp.float32, -bound, bound)
    return w_t, b


def reference_forward(x, w1_t, b1, w2_t, b2, w3_t, b3):
    """Plain-JAX reference with the same bf16-input / f32-accumulate precision."""
    c = lambda a: a.astype(jnp.bfloat16)
    h1 = jnp.maximum(
        jnp.dot(c(x), c(w1_t), preferred_element_type=jnp.float32) + b1, 0.0)
    h2 = jnp.maximum(
        jnp.dot(c(h1), c(w2_t), preferred_element_type=jnp.float32) + b2, 0.0)
    return jnp.dot(c(h2), c(w3_t), preferred_element_type=jnp.float32) + b3


def reference_forward_f32(x, w1_t, b1, w2_t, b2, w3_t, b3):
    """Full-f32 reference (PyTorch semantics), for loose sanity check."""
    h1 = jnp.maximum(x @ w1_t + b1, 0.0)
    h2 = jnp.maximum(h1 @ w2_t + b2, 0.0)
    return h2 @ w3_t + b3


if __name__ == "__main__":
    # PolicyNetwork(input_dims=(16,), fc1_dims=32, fc2_dims=32, n_actions=4),
    # batched over a rollout of states.
    batch = 256
    input_dim = 16
    fc1_dims = 32
    fc2_dims = 32
    n_actions = 4

    key = jax.random.PRNGKey(0)
    k_x, k_1, k_2, k_3 = jax.random.split(key, 4)

    x = jax.random.normal(k_x, (batch, input_dim), jnp.float32)
    w1_t, b1 = _init_linear(k_1, input_dim, fc1_dims)
    w2_t, b2 = _init_linear(k_2, fc1_dims, fc2_dims)
    w3_t, b3 = _init_linear(k_3, fc2_dims, n_actions)

    # One-time weight preparation (bf16 cast + lane padding), outside the hot path.
    params = prepare_params(w1_t, b1, w2_t, b2, w3_t, b3)

    ref = reference_forward(x, w1_t, b1, w2_t, b2, w3_t, b3)
    ref_f32 = reference_forward_f32(x, w1_t, b1, w2_t, b2, w3_t, b3)

    # Default path: chip-appropriate grid (1 step on v5e/v6e, 2 on v7x).
    out = policy_forward(x, params, n_actions=n_actions)
    out = jax.block_until_ready(out)
    assert out.shape == (batch, n_actions)
    assert jnp.allclose(out, ref, atol=2e-2, rtol=2e-2), "mismatch vs bf16 ref"
    assert jnp.allclose(out, ref_f32, atol=6e-2, rtol=6e-2), "mismatch vs f32 ref"

    # Explicit dual-TensorCore style run: 2 parallel batch tiles.
    out2 = policy_forward(x, params, n_actions=n_actions, num_batch_tiles=2)
    out2 = jax.block_until_ready(out2)
    assert jnp.allclose(out2, ref, atol=2e-2, rtol=2e-2), "2-tile mismatch"

    # Ragged / small batch path (zero-padded to a 16-row tile internally).
    out_small = policy_forward(x[:10], params, n_actions=n_actions)
    out_small = jax.block_until_ready(out_small)
    assert out_small.shape == (10, n_actions)
    assert jnp.allclose(out_small, ref[:10], atol=2e-2, rtol=2e-2), "small-batch mismatch"

    # Fused softmax epilogue (action probabilities) on the otherwise-idle EUP/XLU.
    probs = policy_forward(x, params, n_actions=n_actions, apply_softmax=True)
    probs = jax.block_until_ready(probs)
    ref_probs = jax.nn.softmax(ref, axis=-1)
    assert probs.shape == (batch, n_actions)
    assert jnp.allclose(probs, ref_probs, atol=2e-2, rtol=2e-2), "softmax mismatch"
    assert jnp.allclose(jnp.sum(probs, axis=-1), 1.0, atol=2e-2), "probs don't sum to 1"

    print("KERNEL_OK")
</pallas_src>

<mosaic_0001>
module attributes {stable_mosaic.version = 11 : i64} {
  func.func @_policy_mlp_kernel(%arg0: i32, %arg1: memref<256x16xbf16, #tpu.memory_space<vmem>>, %arg2: memref<16x32xbf16, #tpu.memory_space<vmem>>, %arg3: memref<1x32xf32, #tpu.memory_space<vmem>>, %arg4: memref<32x32xbf16, #tpu.memory_space<vmem>>, %arg5: memref<1x32xf32, #tpu.memory_space<vmem>>, %arg6: memref<32x128xbf16, #tpu.memory_space<vmem>>, %arg7: memref<1x128xf32, #tpu.memory_space<vmem>>, %arg8: memref<256x128xbf16, #tpu.memory_space<vmem>>) attributes {dimension_semantics = [#tpu.dimension_semantics<parallel>], iteration_bounds = array<i64: 1>, scalar_prefetch = 0 : i64, scratch_operands = 0 : i64, tpu.core_type = #tpu.core_type<tc>, window_params = [{transform_indices = @transform_0, window_bounds = array<i64: 256, 16>}, {pipeline_mode = #tpu.pipeline_mode<synchronous>, transform_indices = @transform_1, window_bounds = array<i64: 16, 32>}, {pipeline_mode = #tpu.pipeline_mode<synchronous>, transform_indices = @transform_2, window_bounds = array<i64: 1, 32>}, {pipeline_mode = #tpu.pipeline_mode<synchronous>, transform_indices = @transform_3, window_bounds = array<i64: 32, 32>}, {pipeline_mode = #tpu.pipeline_mode<synchronous>, transform_indices = @transform_4, window_bounds = array<i64: 1, 32>}, {pipeline_mode = #tpu.pipeline_mode<synchronous>, transform_indices = @transform_5, window_bounds = array<i64: 32, 128>}, {pipeline_mode = #tpu.pipeline_mode<synchronous>, transform_indices = @transform_6, window_bounds = array<i64: 1, 128>}, {transform_indices = @transform_7, window_bounds = array<i64: 256, 128>}]} {
    %c0 = arith.constant 0 : index
    %c0_0 = arith.constant 0 : index
    %0 = vector.load %arg1[%c0, %c0_0] : memref<256x16xbf16, #tpu.memory_space<vmem>>, vector<256x16xbf16>
    %c0_1 = arith.constant 0 : index
    %c0_2 = arith.constant 0 : index
    %1 = vector.load %arg2[%c0_1, %c0_2] : memref<16x32xbf16, #tpu.memory_space<vmem>>, vector<16x32xbf16>
    %cst = arith.constant dense<0.000000e+00> : vector<256x32xf32>
    %2 = tpu.matmul %0, %1, %cst {dimension_numbers = #tpu.dot_dimension_numbers<[1], [0], [0], [1], [0, 0, 1, 1], [], []>} : vector<256x16xbf16>, vector<16x32xbf16>, vector<256x32xf32> -> vector<256x32xf32>
    %c0_3 = arith.constant 0 : index
    %c0_4 = arith.constant 0 : index
    %3 = vector.load %arg3[%c0_3, %c0_4] : memref<1x32xf32, #tpu.memory_space<vmem>>, vector<1x32xf32>
    %4 = vector.broadcast %3 : vector<1x32xf32> to vector<256x32xf32>
    %5 = arith.addf %2, %4 : vector<256x32xf32>
    %cst_5 = arith.constant 0.000000e+00 : f32
    %6 = vector.broadcast %cst_5 : f32 to vector<256x32xf32>
    %7 = arith.maximumf %5, %6 : vector<256x32xf32>
    %8 = arith.truncf %7 : vector<256x32xf32> to vector<256x32xbf16>
    %c0_6 = arith.constant 0 : index
    %c0_7 = arith.constant 0 : index
    %9 = vector.load %arg4[%c0_6, %c0_7] : memref<32x32xbf16, #tpu.memory_space<vmem>>, vector<32x32xbf16>
    %cst_8 = arith.constant dense<0.000000e+00> : vector<256x32xf32>
    %10 = tpu.matmul %8, %9, %cst_8 {dimension_numbers = #tpu.dot_dimension_numbers<[1], [0], [0], [1], [0, 0, 1, 1], [], []>} : vector<256x32xbf16>, vector<32x32xbf16>, vector<256x32xf32> -> vector<256x32xf32>
    %c0_9 = arith.constant 0 : index
    %c0_10 = arith.constant 0 : index
    %11 = vector.load %arg5[%c0_9, %c0_10] : memref<1x32xf32, #tpu.memory_space<vmem>>, vector<1x32xf32>
    %12 = vector.broadcast %11 : vector<1x32xf32> to vector<256x32xf32>
    %13 = arith.addf %10, %12 : vector<256x32xf32>
    %cst_11 = arith.constant 0.000000e+00 : f32
    %14 = vector.broadcast %cst_11 : f32 to vector<256x32xf32>
    %15 = arith.maximumf %13, %14 : vector<256x32xf32>
    %16 = arith.truncf %15 : vector<256x32xf32> to vector<256x32xbf16>
    %c0_12 = arith.constant 0 : index
    %c0_13 = arith.constant 0 : index
    %17 = vector.load %arg6[%c0_12, %c0_13] : memref<32x128xbf16, #tpu.memory_space<vmem>>, vector<32x128xbf16>
    %cst_14 = arith.constant dense<0.000000e+00> : vector<256x128xf32>
    %18 = tpu.matmul %16, %17, %cst_14 {dimension_numbers = #tpu.dot_dimension_numbers<[1], [0], [0], [1], [0, 0, 1, 1], [], []>} : vector<256x32xbf16>, vector<32x128xbf16>, vector<256x128xf32> -> vector<256x128xf32>
    %c0_15 = arith.constant 0 : index
    %c0_16 = arith.constant 0 : index
    %19 = vector.load %arg7[%c0_15, %c0_16] : memref<1x128xf32, #tpu.memory_space<vmem>>, vector<1x128xf32>
    %20 = vector.broadcast %19 : vector<1x128xf32> to vector<256x128xf32>
    %21 = arith.addf %18, %20 : vector<256x128xf32>
    %22 = arith.truncf %21 : vector<256x128xf32> to vector<256x128xbf16>
    %c0_17 = arith.constant 0 : index
    %c0_18 = arith.constant 0 : index
    %23 = vector.load %arg8[%c0_17, %c0_18] : memref<256x128xbf16, #tpu.memory_space<vmem>>, vector<256x128xbf16>
    tpu.vector_store %arg8[%c0_17, %c0_18], %22 {strides = array<i32>} : memref<256x128xbf16, #tpu.memory_space<vmem>>, vector<256x128xbf16>,
    return
  }
  func.func @transform_0(%arg0: i32) -> (i32, i32) {
    %c0_i32 = arith.constant 0 : i32
    %c0_i32_0 = arith.constant 0 : i32
    return %arg0, %c0_i32 : i32, i32
  }
  func.func @transform_1(%arg0: i32) -> (i32, i32) {
    %c0_i32 = arith.constant 0 : i32
    %c0_i32_0 = arith.constant 0 : i32
    %c0_i32_1 = arith.constant 0 : i32
    return %c0_i32, %c0_i32_0 : i32, i32
  }
  func.func @transform_2(%arg0: i32) -> (i32, i32) {
    %c0_i32 = arith.constant 0 : i32
    %c0_i32_0 = arith.constant 0 : i32
    %c0_i32_1 = arith.constant 0 : i32
    return %c0_i32, %c0_i32_0 : i32, i32
  }
  func.func @transform_3(%arg0: i32) -> (i32, i32) {
    %c0_i32 = arith.constant 0 : i32
    %c0_i32_0 = arith.constant 0 : i32
    %c0_i32_1 = arith.constant 0 : i32
    return %c0_i32, %c0_i32_0 : i32, i32
  }
  func.func @transform_4(%arg0: i32) -> (i32, i32) {
    %c0_i32 = arith.constant 0 : i32
    %c0_i32_0 = arith.constant 0 : i32
    %c0_i32_1 = arith.constant 0 : i32
    return %c0_i32, %c0_i32_0 : i32, i32
  }
  func.func @transform_5(%arg0: i32) -> (i32, i32) {
    %c0_i32 = arith.constant 0 : i32
    %c0_i32_0 = arith.constant 0 : i32
    %c0_i32_1 = arith.constant 0 : i32
    return %c0_i32, %c0_i32_0 : i32, i32
  }
  func.func @transform_6(%arg0: i32) -> (i32, i32) {
    %c0_i32 = arith.constant 0 : i32
    %c0_i32_0 = arith.constant 0 : i32
    %c0_i32_1 = arith.constant 0 : i32
    return %c0_i32, %c0_i32_0 : i32, i32
  }
  func.func @transform_7(%arg0: i32) -> (i32, i32) {
    %c0_i32 = arith.constant 0 : i32
    %c0_i32_0 = arith.constant 0 : i32
    return %arg0, %c0_i32 : i32, i32
  }
}

</mosaic_0001>

<llo_original>
// kernel: policy_forward.1
$region0: #{policy_forward.1}
  #allocation0 [shape = 'u32[]', space=smem, size = 0x4, offset = 0x4, fixed_abs, tag = 'smem constant byte address 0x4 - core index']
  #allocation1 [shape = 'u32[144,128]{1,0:T(1,128)}', space=vmem, size = 0x12000, scoped, tag = 'internal scratch']
  %s0 = inlined_call_operand.vmem [shape: bf16[256,16], index: 0, kind: input, shape index: {}]
  %s1 = inlined_call_operand.vmem [shape: bf16[16,32], index: 1, kind: input, shape index: {}]
  %s2 = inlined_call_operand.vmem [shape: f32[1,32], index: 2, kind: input, shape index: {}]
  %s3 = inlined_call_operand.vmem [shape: bf16[32,32], index: 3, kind: input, shape index: {}]
  %s4 = inlined_call_operand.vmem [shape: f32[1,32], index: 4, kind: input, shape index: {}]
  %s5 = inlined_call_operand.vmem [shape: bf16[32,128], index: 5, kind: input, shape index: {}]
  %s6 = inlined_call_operand.vmem [shape: f32[1,128], index: 6, kind: input, shape index: {}]
  %s7 = inlined_call_operand.vmem [shape: bf16[256,128], index: 7, kind: output, shape index: {}]
  %s8 = sld [smem:[#allocation0]]
  $region38: #{policy_forward.1} parent=0
    _
  %s10 = ssub.s32 1, %s8
  %s11 = scalar_select 0, %s10, %s8
  // Predicated region
  $region2: #{policy_forward.1} parent=0 // pred_check
    _
  $region3: #{policy_forward.1} parent=0 // pred_check_branch
    %13 = sbr.rel (0) target = $region5
  $region4: #{policy_forward.1} parent=0 // pred_region
    _
  $region5: #{policy_forward.1} parent=0 // pred_fallthru
    _
  // Predicated region
  $region6: #{policy_forward.1} parent=0 // pred_check
    _
  $region7: #{policy_forward.1} parent=0 // pred_check_branch
    %15 = sbr.rel (0) target = $region9
  $region8: #{policy_forward.1} parent=0 // pred_region
    _
  $region9: #{policy_forward.1} parent=0 // pred_fallthru
    _
  // Predicated region
  $region10: #{policy_forward.1} parent=0 // pred_check
    _
  $region11: #{policy_forward.1} parent=0 // pred_check_branch
    %17 = sbr.rel (0) target = $region13
  $region12: #{policy_forward.1} parent=0 // pred_region
    _
  $region13: #{policy_forward.1} parent=0 // pred_fallthru
    _
  // Predicated region
  $region14: #{policy_forward.1} parent=0 // pred_check
    _
  $region15: #{policy_forward.1} parent=0 // pred_check_branch
    %19 = sbr.rel (0) target = $region17
  $region16: #{policy_forward.1} parent=0 // pred_region
    _
  $region17: #{policy_forward.1} parent=0 // pred_fallthru
    _
  // Predicated region
  $region18: #{policy_forward.1} parent=0 // pred_check
    _
  $region19: #{policy_forward.1} parent=0 // pred_check_branch
    %21 = sbr.rel (0) target = $region21
  $region20: #{policy_forward.1} parent=0 // pred_region
    _
  $region21: #{policy_forward.1} parent=0 // pred_fallthru
    _
  // Predicated region
  $region22: #{policy_forward.1} parent=0 // pred_check
    _
  $region23: #{policy_forward.1} parent=0 // pred_check_branch
    %23 = sbr.rel (0) target = $region25
  $region24: #{policy_forward.1} parent=0 // pred_region
    _
  $region25: #{policy_forward.1} parent=0 // pred_fallthru
    _
  // Predicated region
  $region26: #{policy_forward.1} parent=0 // pred_check
    _
  $region27: #{policy_forward.1} parent=0 // pred_check_branch
    %25 = sbr.rel (0) target = $region29
  $region28: #{policy_forward.1} parent=0 // pred_region
    _
  $region29: #{policy_forward.1} parent=0 // pred_fallthru
    _
  %v27 = vld [vmem:[%s0] sm:$0xf]
  %v28 = vld [vmem:[%s0 + $0x4] sm:$0xf]
  %v29 = vld [vmem:[%s0 + $0x8] sm:$0xf]
  %v30 = vld [vmem:[%s0 + $0xc] sm:$0xf]
  %v31 = vld [vmem:[%s0 + $0x10] sm:$0xf]
  %v32 = vld [vmem:[%s0 + $0x14] sm:$0xf]
  %v33 = vld [vmem:[%s0 + $0x18] sm:$0xf]
  %v34 = vld [vmem:[%s0 + $0x1c] sm:$0xf]
  %v35 = vld [vmem:[%s0 + $0x20] sm:$0xf]
  %v36 = vld [vmem:[%s0 + $0x24] sm:$0xf]
  %v37 = vld [vmem:[%s0 + $0x28] sm:$0xf]
  %v38 = vld [vmem:[%s0 + $0x2c] sm:$0xf]
  %v39 = vld [vmem:[%s0 + $0x30] sm:$0xf]
  %v40 = vld [vmem:[%s0 + $0x34] sm:$0xf]
  %v41 = vld [vmem:[%s0 + $0x38] sm:$0xf]
  %v42 = vld [vmem:[%s0 + $0x3c] sm:$0xf]
  %v43 = vld [vmem:[%s0 + $0x40] sm:$0xf]
  %v44 = vld [vmem:[%s0 + $0x44] sm:$0xf]
  %v45 = vld [vmem:[%s0 + $0x48] sm:$0xf]
  %v46 = vld [vmem:[%s0 + $0x4c] sm:$0xf]
  %v47 = vld [vmem:[%s0 + $0x50] sm:$0xf]
  %v48 = vld [vmem:[%s0 + $0x54] sm:$0xf]
  %v49 = vld [vmem:[%s0 + $0x58] sm:$0xf]
  %v50 = vld [vmem:[%s0 + $0x5c] sm:$0xf]
  %v51 = vld [vmem:[%s0 + $0x60] sm:$0xf]
  %v52 = vld [vmem:[%s0 + $0x64] sm:$0xf]
  %v53 = vld [vmem:[%s0 + $0x68] sm:$0xf]
  %v54 = vld [vmem:[%s0 + $0x6c] sm:$0xf]
  %v55 = vld [vmem:[%s0 + $0x70] sm:$0xf]
  %v56 = vld [vmem:[%s0 + $0x74] sm:$0xf]
  %v57 = vld [vmem:[%s0 + $0x78] sm:$0xf]
  %v58 = vld [vmem:[%s0 + $0x7c] sm:$0xf]
  %v59 = vld [vmem:[%s1] sm:$0xf]
  %v60 = vld [vmem:[%s1 + $0x4] sm:$0xf]
  %v61 = vld [vmem:[%s2] sm:$0x1]
  %v63 = vlaneseq
  %v64 = vshrl.u32 %v63, 7
  %v65 = vsub.s32 0, %v64
  %v66 = vrot.slane %v61, %v65
  %v100 = vunpack.c.l.b16 %v27
  %v101 = vunpack.c.l.b16 %v28
  %v102 = vunpack.c.l.b16 %v29
  %v103 = vunpack.c.l.b16 %v30
  %v104 = vunpack.c.l.b16 %v31
  %v105 = vunpack.c.l.b16 %v32
  %v106 = vunpack.c.l.b16 %v33
  %v107 = vunpack.c.l.b16 %v34
  %v108 = vunpack.c.l.b16 %v35
  %v109 = vunpack.c.l.b16 %v36
  %v110 = vunpack.c.l.b16 %v37
  %v111 = vunpack.c.l.b16 %v38
  %v112 = vunpack.c.l.b16 %v39
  %v113 = vunpack.c.l.b16 %v40
  %v114 = vunpack.c.l.b16 %v41
  %v115 = vunpack.c.l.b16 %v42
  %v116 = vunpack.c.l.b16 %v43
  %v117 = vunpack.c.l.b16 %v44
  %v118 = vunpack.c.l.b16 %v45
  %v119 = vunpack.c.l.b16 %v46
  %v120 = vunpack.c.l.b16 %v47
  %v121 = vunpack.c.l.b16 %v48
  %v122 = vunpack.c.l.b16 %v49
  %v123 = vunpack.c.l.b16 %v50
  %v124 = vunpack.c.l.b16 %v51
  %v125 = vunpack.c.l.b16 %v52
  %v126 = vunpack.c.l.b16 %v53
  %v127 = vunpack.c.l.b16 %v54
  %v128 = vunpack.c.l.b16 %v55
  %v129 = vunpack.c.l.b16 %v56
  %v130 = vunpack.c.l.b16 %v57
  %v131 = vunpack.c.l.b16 %v58
  %v132 = vpack.c.b16 %v101, %v100
  %v133 = vpack.c.b16 %v103, %v102
  %v134 = vpack.c.b16 %v105, %v104
  %v135 = vpack.c.b16 %v107, %v106
  %v136 = vpack.c.b16 %v109, %v108
  %v137 = vpack.c.b16 %v111, %v110
  %v138 = vpack.c.b16 %v113, %v112
  %v139 = vpack.c.b16 %v115, %v114
  %v140 = vpack.c.b16 %v117, %v116
  %v141 = vpack.c.b16 %v119, %v118
  %v142 = vpack.c.b16 %v121, %v120
  %v143 = vpack.c.b16 %v123, %v122
  %v144 = vpack.c.b16 %v125, %v124
  %v145 = vpack.c.b16 %v127, %v126
  %v146 = vpack.c.b16 %v129, %v128
  %v147 = vpack.c.b16 %v131, %v130
  %v150 = vunpack.c.l.b16 %v59
  %v151 = vunpack.c.l.b16 %v60
  %v152 = vpack.c.b16 %v151, %v150
  %vm154 = vcmask 130048
  %v156 = vsel %vm154, %v132, 0
  %v159 = vsel %vm154, %v133, 0
  %v162 = vsel %vm154, %v134, 0
  %v165 = vsel %vm154, %v135, 0
  %v168 = vsel %vm154, %v136, 0
  %v171 = vsel %vm154, %v137, 0
  %v174 = vsel %vm154, %v138, 0
  %v177 = vsel %vm154, %v139, 0
  %v180 = vsel %vm154, %v140, 0
  %v183 = vsel %vm154, %v141, 0
  %v186 = vsel %vm154, %v142, 0
  %v189 = vsel %vm154, %v143, 0
  %v192 = vsel %vm154, %v144, 0
  %v195 = vsel %vm154, %v145, 0
  %v198 = vsel %vm154, %v146, 0
  %v201 = vsel %vm154, %v147, 0
  %203 = vmatprep.subr.bf16.mxu0 0
  %204 = vmatpush1.bf16.msra.mxu0 0
  %205 = vmatprep.subr.bf16.mxu0 0
  %206 = vmatpush1.bf16.msra.mxu0 0
  %207 = vmatprep.subr.bf16.mxu0 0
  %208 = vmatpush1.bf16.msra.mxu0 0
  %209 = vmatprep.subr.bf16.mxu0 0
  %210 = vmatpush1.bf16.msra.mxu0 0
  %211 = vmatprep.subr.bf16.mxu0 0
  %212 = vmatpush1.bf16.msra.mxu0 0
  %213 = vmatprep.subr.bf16.mxu0 0
  %214 = vmatpush1.bf16.msra.mxu0 0
  %215 = vmatprep.subr.bf16.mxu0 0
  %216 = vmatpush1.bf16.msra.mxu0 0
  %217 = vmatprep.subr.bf16.mxu0 0
  %218 = vmatpush1.bf16.msra.mxu0 %v152
  %219 = vmatprep.subr.bf16.mxu0 0
  %220 = vmatpush2.bf16.msra.mxu0 0
  %221 = vmatprep.subr.bf16.mxu0 0
  %222 = vmatpush2.bf16.msra.mxu0 0
  %223 = vmatprep.subr.bf16.mxu0 0
  %224 = vmatpush2.bf16.msra.mxu0 0
  %225 = vmatprep.subr.bf16.mxu0 0
  %226 = vmatpush2.bf16.msra.mxu0 0
  %227 = vmatprep.subr.bf16.mxu0 0
  %228 = vmatpush2.bf16.msra.mxu0 0
  %229 = vmatprep.subr.bf16.mxu0 0
  %230 = vmatpush2.bf16.msra.mxu0 0
  %231 = vmatprep.subr.bf16.mxu0 0
  %232 = vmatpush2.bf16.msra.mxu0 0
  %233 = vmatprep.subr.bf16.mxu0 0
  %234 = vmatpush2.bf16.msra.mxu0 0
  %235 = vmatprep.mubr.bf16.mxu0 0
  %236 = vmatmul.mubr.bf16.gmra.mxu0 %v156
  %v237 = vpop.f32.mrf.mxu0
  %v238 = vadd.f32 %v66, %v237
  %v239 = vpop.f32.mrf.mxu0
  %v240 = vpop.f32.mrf.mxu0
  %v241 = vadd.f32 %v66, %v240
  %v242 = vpop.f32.mrf.mxu0
  %243 = vmatprep.mubr.bf16.mxu0 0
  %244 = vmatmul.mubr.bf16.gmra.mxu0 %v159
  %v245 = vpop.f32.mrf.mxu0
  %v246 = vadd.f32 %v66, %v245
  %v247 = vpop.f32.mrf.mxu0
  %v248 = vpop.f32.mrf.mxu0
  %v249 = vadd.f32 %v66, %v248
  %v250 = vpop.f32.mrf.mxu0
  %251 = vmatprep.mubr.bf16.mxu0 0
  %252 = vmatmul.mubr.bf16.gmra.mxu0 %v162
  %v253 = vpop.f32.mrf.mxu0
  %v254 = vadd.f32 %v66, %v253
  %v255 = vpop.f32.mrf.mxu0
  %v256 = vpop.f32.mrf.mxu0
  %v257 = vadd.f32 %v66, %v256
  %v258 = vpop.f32.mrf.mxu0
  %259 = vmatprep.mubr.bf16.mxu0 0
  %260 = vmatmul.mubr.bf16.gmra.mxu0 %v165
  %v261 = vpop.f32.mrf.mxu0
  %v262 = vadd.f32 %v66, %v261
  %v263 = vpop.f32.mrf.mxu0
  %v264 = vpop.f32.mrf.mxu0
  %v265 = vadd.f32 %v66, %v264
  %v266 = vpop.f32.mrf.mxu0
  %267 = vmatprep.mubr.bf16.mxu0 0
  %268 = vmatmul.mubr.bf16.gmra.mxu0 %v168
  %v269 = vpop.f32.mrf.mxu0
  %v270 = vadd.f32 %v66, %v269
  %v271 = vpop.f32.mrf.mxu0
  %v272 = vpop.f32.mrf.mxu0
  %v273 = vadd.f32 %v66, %v272
  %v274 = vpop.f32.mrf.mxu0
  %275 = vmatprep.mubr.bf16.mxu0 0
  %276 = vmatmul.mubr.bf16.gmra.mxu0 %v171
  %v277 = vpop.f32.mrf.mxu0
  %v278 = vadd.f32 %v66, %v277
  %v279 = vpop.f32.mrf.mxu0
  %v280 = vpop.f32.mrf.mxu0
  %v281 = vadd.f32 %v66, %v280
  %v282 = vpop.f32.mrf.mxu0
  %283 = vmatprep.mubr.bf16.mxu0 0
  %284 = vmatmul.mubr.bf16.gmra.mxu0 %v174
  %v285 = vpop.f32.mrf.mxu0
  %v286 = vadd.f32 %v66, %v285
  %v287 = vpop.f32.mrf.mxu0
  %v288 = vpop.f32.mrf.mxu0
  %v289 = vadd.f32 %v66, %v288
  %v290 = vpop.f32.mrf.mxu0
  %291 = vmatprep.mubr.bf16.mxu0 0
  %292 = vmatmul.mubr.bf16.gmra.mxu0 %v177
  %v293 = vpop.f32.mrf.mxu0
  %v294 = vadd.f32 %v66, %v293
  %v295 = vpop.f32.mrf.mxu0
  %v296 = vpop.f32.mrf.mxu0
  %v297 = vadd.f32 %v66, %v296
  %v298 = vpop.f32.mrf.mxu0
  %299 = vmatprep.mubr.bf16.mxu0 0
  %300 = vmatmul.mubr.bf16.gmra.mxu0 %v180
  %v301 = vpop.f32.mrf.mxu0
  %v302 = vadd.f32 %v66, %v301
  %v303 = vpop.f32.mrf.mxu0
  %v304 = vpop.f32.mrf.mxu0
  %v305 = vadd.f32 %v66, %v304
  %v306 = vpop.f32.mrf.mxu0
  %307 = vmatprep.mubr.bf16.mxu0 0
  %308 = vmatmul.mubr.bf16.gmra.mxu0 %v183
  %v309 = vpop.f32.mrf.mxu0
  %v310 = vadd.f32 %v66, %v309
  %v311 = vpop.f32.mrf.mxu0
  %v312 = vpop.f32.mrf.mxu0
  %v313 = vadd.f32 %v66, %v312
  %v314 = vpop.f32.mrf.mxu0
  %315 = vmatprep.mubr.bf16.mxu0 0
  %316 = vmatmul.mubr.bf16.gmra.mxu0 %v186
  %v317 = vpop.f32.mrf.mxu0
  %v318 = vadd.f32 %v66, %v317
  %v319 = vpop.f32.mrf.mxu0
  %v320 = vpop.f32.mrf.mxu0
  %v321 = vadd.f32 %v66, %v320
  %v322 = vpop.f32.mrf.mxu0
  %323 = vmatprep.mubr.bf16.mxu0 0
  %324 = vmatmul.mubr.bf16.gmra.mxu0 %v189
  %v325 = vpop.f32.mrf.mxu0
  %v326 = vadd.f32 %v66, %v325
  %v327 = vpop.f32.mrf.mxu0
  %v328 = vpop.f32.mrf.mxu0
  %v329 = vadd.f32 %v66, %v328
  %v330 = vpop.f32.mrf.mxu0
  %331 = vmatprep.mubr.bf16.mxu0 0
  %332 = vmatmul.mubr.bf16.gmra.mxu0 %v192
  %v333 = vpop.f32.mrf.mxu0
  %v334 = vadd.f32 %v66, %v333
  %v335 = vpop.f32.mrf.mxu0
  %v336 = vpop.f32.mrf.mxu0
  %v337 = vadd.f32 %v66, %v336
  %v338 = vpop.f32.mrf.mxu0
  %339 = vmatprep.mubr.bf16.mxu0 0
  %340 = vmatmul.mubr.bf16.gmra.mxu0 %v195
  %v341 = vpop.f32.mrf.mxu0
  %v342 = vadd.f32 %v66, %v341
  %v343 = vpop.f32.mrf.mxu0
  %v344 = vpop.f32.mrf.mxu0
  %v345 = vadd.f32 %v66, %v344
  %v346 = vpop.f32.mrf.mxu0
  %347 = vmatprep.mubr.bf16.mxu0 0
  %348 = vmatmul.mubr.bf16.gmra.mxu0 %v198
  %v349 = vpop.f32.mrf.mxu0
  %v350 = vadd.f32 %v66, %v349
  %v351 = vpop.f32.mrf.mxu0
  %v352 = vpop.f32.mrf.mxu0
  %v353 = vadd.f32 %v66, %v352
  %v354 = vpop.f32.mrf.mxu0
  %355 = vmatprep.mubr.bf16.mxu0 0
  %356 = vmatmul.mubr.bf16.gmra.mxu0 %v201
  %v357 = vpop.f32.mrf.mxu0
  %v358 = vadd.f32 %v66, %v357
  %v359 = vpop.f32.mrf.mxu0
  %v360 = vpop.f32.mrf.mxu0
  %v361 = vadd.f32 %v66, %v360
  %v362 = vpop.f32.mrf.mxu0
  %363 = vdwg.mxu0
  %v364 = vmax.f32 %v238, 0.0
  %v365 = vmax.f32 %v241, 0.0
  %v366 = vmax.f32 %v246, 0.0
  %v367 = vmax.f32 %v249, 0.0
  %v368 = vmax.f32 %v254, 0.0
  %v369 = vmax.f32 %v257, 0.0
  %v370 = vmax.f32 %v262, 0.0
  %v371 = vmax.f32 %v265, 0.0
  %v372 = vmax.f32 %v270, 0.0
  %v373 = vmax.f32 %v273, 0.0
  %v374 = vmax.f32 %v278, 0.0
  %v375 = vmax.f32 %v281, 0.0
  %v376 = vmax.f32 %v286, 0.0
  %v377 = vmax.f32 %v289, 0.0
  %v378 = vmax.f32 %v294, 0.0
  %v379 = vmax.f32 %v297, 0.0
  %v380 = vmax.f32 %v302, 0.0
  %v381 = vmax.f32 %v305, 0.0
  %v382 = vmax.f32 %v310, 0.0
  %v383 = vmax.f32 %v313, 0.0
  %v384 = vmax.f32 %v318, 0.0
  %v385 = vmax.f32 %v321, 0.0
  %v386 = vmax.f32 %v326, 0.0
  %v387 = vmax.f32 %v329, 0.0
  %v388 = vmax.f32 %v334, 0.0
  %v389 = vmax.f32 %v337, 0.0
  %v390 = vmax.f32 %v342, 0.0
  %v391 = vmax.f32 %v345, 0.0
  %v392 = vmax.f32 %v350, 0.0
  %v393 = vmax.f32 %v353, 0.0
  %v394 = vmax.f32 %v358, 0.0
  %v395 = vmax.f32 %v361, 0.0
  %v396 = vpack.c.bf16 %v365, %v364
  %v397 = vpack.c.bf16 %v367, %v366
  %v398 = vpack.c.bf16 %v369, %v368
  %v399 = vpack.c.bf16 %v371, %v370
  %v400 = vpack.c.bf16 %v373, %v372
  %v401 = vpack.c.bf16 %v375, %v374
  %v402 = vpack.c.bf16 %v377, %v376
  %v403 = vpack.c.bf16 %v379, %v378
  %v404 = vpack.c.bf16 %v381, %v380
  %v405 = vpack.c.bf16 %v383, %v382
  %v406 = vpack.c.bf16 %v385, %v384
  %v407 = vpack.c.bf16 %v387, %v386
  %v408 = vpack.c.bf16 %v389, %v388
  %v409 = vpack.c.bf16 %v391, %v390
  %v410 = vpack.c.bf16 %v393, %v392
  %v411 = vpack.c.bf16 %v395, %v394
  %v412 = vld [vmem:[%s3] sm:$0xf]
  %v413 = vld [vmem:[%s3 + $0x4] sm:$0xf]
  %v414 = vld [vmem:[%s3 + $0x8] sm:$0xf]
  %v415 = vld [vmem:[%s3 + $0xc] sm:$0xf]
  %v416 = vld [vmem:[%s4] sm:$0x1]
  %v418 = vlaneseq
  %v419 = vshrl.u32 %v418, 7
  %v420 = vsub.s32 0, %v419
  %v421 = vrot.slane %v416, %v420
  %v427 = vunpack.c.l.b16 %v412
  %v428 = vunpack.c.l.b16 %v413
  %v429 = vunpack.c.l.b16 %v414
  %v430 = vunpack.c.l.b16 %v415
  %v431 = vpack.c.b16 %v428, %v427
  %v432 = vpack.c.b16 %v430, %v429
  %vm435 = vcmask 261120
  %v437 = vsel %vm435, %v396, 0
  %v440 = vsel %vm435, %v397, 0
  %v443 = vsel %vm435, %v398, 0
  %v446 = vsel %vm435, %v399, 0
  %v449 = vsel %vm435, %v400, 0
  %v452 = vsel %vm435, %v401, 0
  %v455 = vsel %vm435, %v402, 0
  %v458 = vsel %vm435, %v403, 0
  %v461 = vsel %vm435, %v404, 0
  %v464 = vsel %vm435, %v405, 0
  %v467 = vsel %vm435, %v406, 0
  %v470 = vsel %vm435, %v407, 0
  %v473 = vsel %vm435, %v408, 0
  %v476 = vsel %vm435, %v409, 0
  %v479 = vsel %vm435, %v410, 0
  %v482 = vsel %vm435, %v411, 0
  %484 = vmatprep.subr.bf16.mxu0 0
  %485 = vmatpush1.bf16.msra.mxu0 0
  %486 = vmatprep.subr.bf16.mxu0 0
  %487 = vmatpush1.bf16.msra.mxu0 0
  %488 = vmatprep.subr.bf16.mxu0 0
  %489 = vmatpush1.bf16.msra.mxu0 0
  %490 = vmatprep.subr.bf16.mxu0 0
  %491 = vmatpush1.bf16.msra.mxu0 0
  %492 = vmatprep.subr.bf16.mxu0 0
  %493 = vmatpush1.bf16.msra.mxu0 0
  %494 = vmatprep.subr.bf16.mxu0 0
  %495 = vmatpush1.bf16.msra.mxu0 0
  %496 = vmatprep.subr.bf16.mxu0 0
  %497 = vmatpush1.bf16.msra.mxu0 %v432
  %498 = vmatprep.subr.bf16.mxu0 0
  %499 = vmatpush1.bf16.msra.mxu0 %v431
  %500 = vmatprep.subr.bf16.mxu0 0
  %501 = vmatpush2.bf16.msra.mxu0 0
  %502 = vmatprep.subr.bf16.mxu0 0
  %503 = vmatpush2.bf16.msra.mxu0 0
  %504 = vmatprep.subr.bf16.mxu0 0
  %505 = vmatpush2.bf16.msra.mxu0 0
  %506 = vmatprep.subr.bf16.mxu0 0
  %507 = vmatpush2.bf16.msra.mxu0 0
  %508 = vmatprep.subr.bf16.mxu0 0
  %509 = vmatpush2.bf16.msra.mxu0 0
  %510 = vmatprep.subr.bf16.mxu0 0
  %511 = vmatpush2.bf16.msra.mxu0 0
  %512 = vmatprep.subr.bf16.mxu0 0
  %513 = vmatpush2.bf16.msra.mxu0 0
  %514 = vmatprep.subr.bf16.mxu0 0
  %515 = vmatpush2.bf16.msra.mxu0 0
  %516 = vmatprep.mubr.bf16.mxu0 0
  %517 = vmatmul.mubr.bf16.gmra.mxu0 %v437
  %v518 = vpop.f32.mrf.mxu0
  %v519 = vadd.f32 %v421, %v518
  %v520 = vpop.f32.mrf.mxu0
  %v521 = vpop.f32.mrf.mxu0
  %v522 = vadd.f32 %v421, %v521
  %v523 = vpop.f32.mrf.mxu0
  %524 = vmatprep.mubr.bf16.mxu0 0
  %525 = vmatmul.mubr.bf16.gmra.mxu0 %v440
  %v526 = vpop.f32.mrf.mxu0
  %v527 = vadd.f32 %v421, %v526
  %v528 = vpop.f32.mrf.mxu0
  %v529 = vpop.f32.mrf.mxu0
  %v530 = vadd.f32 %v421, %v529
  %v531 = vpop.f32.mrf.mxu0
  %532 = vmatprep.mubr.bf16.mxu0 0
  %533 = vmatmul.mubr.bf16.gmra.mxu0 %v443
  %v534 = vpop.f32.mrf.mxu0
  %v535 = vadd.f32 %v421, %v534
  %v536 = vpop.f32.mrf.mxu0
  %v537 = vpop.f32.mrf.mxu0
  %v538 = vadd.f32 %v421, %v537
  %v539 = vpop.f32.mrf.mxu0
  %540 = vmatprep.mubr.bf16.mxu0 0
  %541 = vmatmul.mubr.bf16.gmra.mxu0 %v446
  %v542 = vpop.f32.mrf.mxu0
  %v543 = vadd.f32 %v421, %v542
  %v544 = vpop.f32.mrf.mxu0
  %v545 = vpop.f32.mrf.mxu0
  %v546 = vadd.f32 %v421, %v545
  %v547 = vpop.f32.mrf.mxu0
  %548 = vmatprep.mubr.bf16.mxu0 0
  %549 = vmatmul.mubr.bf16.gmra.mxu0 %v449
  %v550 = vpop.f32.mrf.mxu0
  %v551 = vadd.f32 %v421, %v550
  %v552 = vpop.f32.mrf.mxu0
  %v553 = vpop.f32.mrf.mxu0
  %v554 = vadd.f32 %v421, %v553
  %v555 = vpop.f32.mrf.mxu0
  %556 = vmatprep.mubr.bf16.mxu0 0
  %557 = vmatmul.mubr.bf16.gmra.mxu0 %v452
  %v558 = vpop.f32.mrf.mxu0
  %v559 = vadd.f32 %v421, %v558
  %v560 = vpop.f32.mrf.mxu0
  %v561 = vpop.f32.mrf.mxu0
  %v562 = vadd.f32 %v421, %v561
  %v563 = vpop.f32.mrf.mxu0
  %564 = vmatprep.mubr.bf16.mxu0 0
  %565 = vmatmul.mubr.bf16.gmra.mxu0 %v455
  %v566 = vpop.f32.mrf.mxu0
  %v567 = vadd.f32 %v421, %v566
  %v568 = vpop.f32.mrf.mxu0
  %v569 = vpop.f32.mrf.mxu0
  %v570 = vadd.f32 %v421, %v569
  %v571 = vpop.f32.mrf.mxu0
  %572 = vmatprep.mubr.bf16.mxu0 0
  %573 = vmatmul.mubr.bf16.gmra.mxu0 %v458
  %v574 = vpop.f32.mrf.mxu0
  %v575 = vadd.f32 %v421, %v574
  %v576 = vpop.f32.mrf.mxu0
  %v577 = vpop.f32.mrf.mxu0
  %v578 = vadd.f32 %v421, %v577
  %v579 = vpop.f32.mrf.mxu0
  %580 = vmatprep.mubr.bf16.mxu0 0
  %581 = vmatmul.mubr.bf16.gmra.mxu0 %v461
  %v582 = vpop.f32.mrf.mxu0
  %v583 = vadd.f32 %v421, %v582
  %v584 = vpop.f32.mrf.mxu0
  %v585 = vpop.f32.mrf.mxu0
  %v586 = vadd.f32 %v421, %v585
  %v587 = vpop.f32.mrf.mxu0
  %588 = vmatprep.mubr.bf16.mxu0 0
  %589 = vmatmul.mubr.bf16.gmra.mxu0 %v464
  %v590 = vpop.f32.mrf.mxu0
  %v591 = vadd.f32 %v421, %v590
  %v592 = vpop.f32.mrf.mxu0
  %v593 = vpop.f32.mrf.mxu0
  %v594 = vadd.f32 %v421, %v593
  %v595 = vpop.f32.mrf.mxu0
  %596 = vmatprep.mubr.bf16.mxu0 0
  %597 = vmatmul.mubr.bf16.gmra.mxu0 %v467
  %v598 = vpop.f32.mrf.mxu0
  %v599 = vadd.f32 %v421, %v598
  %v600 = vpop.f32.mrf.mxu0
  %v601 = vpop.f32.mrf.mxu0
  %v602 = vadd.f32 %v421, %v601
  %v603 = vpop.f32.mrf.mxu0
  %604 = vmatprep.mubr.bf16.mxu0 0
  %605 = vmatmul.mubr.bf16.gmra.mxu0 %v470
  %v606 = vpop.f32.mrf.mxu0
  %v607 = vadd.f32 %v421, %v606
  %v608 = vpop.f32.mrf.mxu0
  %v609 = vpop.f32.mrf.mxu0
  %v610 = vadd.f32 %v421, %v609
  %v611 = vpop.f32.mrf.mxu0
  %612 = vmatprep.mubr.bf16.mxu0 0
  %613 = vmatmul.mubr.bf16.gmra.mxu0 %v473
  %v614 = vpop.f32.mrf.mxu0
  %v615 = vadd.f32 %v421, %v614
  %v616 = vpop.f32.mrf.mxu0
  %v617 = vpop.f32.mrf.mxu0
  %v618 = vadd.f32 %v421, %v617
  %v619 = vpop.f32.mrf.mxu0
  %620 = vmatprep.mubr.bf16.mxu0 0
  %621 = vmatmul.mubr.bf16.gmra.mxu0 %v476
  %v622 = vpop.f32.mrf.mxu0
  %v623 = vadd.f32 %v421, %v622
  %v624 = vpop.f32.mrf.mxu0
  %v625 = vpop.f32.mrf.mxu0
  %v626 = vadd.f32 %v421, %v625
  %v627 = vpop.f32.mrf.mxu0
  %628 = vmatprep.mubr.bf16.mxu0 0
  %629 = vmatmul.mubr.bf16.gmra.mxu0 %v479
  %v630 = vpop.f32.mrf.mxu0
  %v631 = vadd.f32 %v421, %v630
  %v632 = vpop.f32.mrf.mxu0
  %v633 = vpop.f32.mrf.mxu0
  %v634 = vadd.f32 %v421, %v633
  %v635 = vpop.f32.mrf.mxu0
  %636 = vmatprep.mubr.bf16.mxu0 0
  %637 = vmatmul.mubr.bf16.gmra.mxu0 %v482
  %v638 = vpop.f32.mrf.mxu0
  %v639 = vadd.f32 %v421, %v638
  %v640 = vpop.f32.mrf.mxu0
  %v641 = vpop.f32.mrf.mxu0
  %v642 = vadd.f32 %v421, %v641
  %v643 = vpop.f32.mrf.mxu0
  %644 = vdwg.mxu0
  %v645 = vmax.f32 %v519, 0.0
  %v646 = vmax.f32 %v522, 0.0
  %v647 = vmax.f32 %v527, 0.0
  %v648 = vmax.f32 %v530, 0.0
  %v649 = vmax.f32 %v535, 0.0
  %v650 = vmax.f32 %v538, 0.0
  %v651 = vmax.f32 %v543, 0.0
  %v652 = vmax.f32 %v546, 0.0
  %v653 = vmax.f32 %v551, 0.0
  %v654 = vmax.f32 %v554, 0.0
  %v655 = vmax.f32 %v559, 0.0
  %v656 = vmax.f32 %v562, 0.0
  %v657 = vmax.f32 %v567, 0.0
  %v658 = vmax.f32 %v570, 0.0
  %v659 = vmax.f32 %v575, 0.0
  %v660 = vmax.f32 %v578, 0.0
  %v661 = vmax.f32 %v583, 0.0
  %v662 = vmax.f32 %v586, 0.0
  %v663 = vmax.f32 %v591, 0.0
  %v664 = vmax.f32 %v594, 0.0
  %v665 = vmax.f32 %v599, 0.0
  %v666 = vmax.f32 %v602, 0.0
  %v667 = vmax.f32 %v607, 0.0
  %v668 = vmax.f32 %v610, 0.0
  %v669 = vmax.f32 %v615, 0.0
  %v670 = vmax.f32 %v618, 0.0
  %v671 = vmax.f32 %v623, 0.0
  %v672 = vmax.f32 %v626, 0.0
  %v673 = vmax.f32 %v631, 0.0
  %v674 = vmax.f32 %v634, 0.0
  %v675 = vmax.f32 %v639, 0.0
  %v676 = vmax.f32 %v642, 0.0
  %v677 = vpack.c.bf16 %v646, %v645
  %v678 = vpack.c.bf16 %v648, %v647
  %v679 = vpack.c.bf16 %v650, %v649
  %v680 = vpack.c.bf16 %v652, %v651
  %v681 = vpack.c.bf16 %v654, %v653
  %v682 = vpack.c.bf16 %v656, %v655
  %v683 = vpack.c.bf16 %v658, %v657
  %v684 = vpack.c.bf16 %v660, %v659
  %v685 = vpack.c.bf16 %v662, %v661
  %v686 = vpack.c.bf16 %v664, %v663
  %v687 = vpack.c.bf16 %v666, %v665
  %v688 = vpack.c.bf16 %v668, %v667
  %v689 = vpack.c.bf16 %v670, %v669
  %v690 = vpack.c.bf16 %v672, %v671
  %v691 = vpack.c.bf16 %v674, %v673
  %v692 = vpack.c.bf16 %v676, %v675
  %v693 = vld [vmem:[%s5] sm:$0xf]
  %v694 = vld [vmem:[%s5 + $0x4] sm:$0xf]
  %v695 = vld [vmem:[%s5 + $0x8] sm:$0xf]
  %v696 = vld [vmem:[%s5 + $0xc] sm:$0xf]
  %v697 = vld [vmem:[%s6] sm:$0x1]
  %v699 = vlaneseq
  %v700 = vshrl.u32 %v699, 7
  %v701 = vsub.s32 0, %v700
  %v702 = vrot.slane %v697, %v701
  %v708 = vunpack.c.l.b16 %v693
  %v709 = vunpack.c.l.b16 %v694
  %v710 = vunpack.c.l.b16 %v695
  %v711 = vunpack.c.l.b16 %v696
  %v712 = vpack.c.b16 %v709, %v708
  %v713 = vpack.c.b16 %v711, %v710
  %v717 = vsel %vm435, %v677, 0
  %v720 = vsel %vm435, %v678, 0
  %v723 = vsel %vm435, %v679, 0
  %v726 = vsel %vm435, %v680, 0
  %v729 = vsel %vm435, %v681, 0
  %v732 = vsel %vm435, %v682, 0
  %v735 = vsel %vm435, %v683, 0
  %v738 = vsel %vm435, %v684, 0
  %v741 = vsel %vm435, %v685, 0
  %v744 = vsel %vm435, %v686, 0
  %v747 = vsel %vm435, %v687, 0
  %v750 = vsel %vm435, %v688, 0
  %v753 = vsel %vm435, %v689, 0
  %v756 = vsel %vm435, %v690, 0
  %v759 = vsel %vm435, %v691, 0
  %v762 = vsel %vm435, %v692, 0
  %764 = vmatprep.subr.bf16.mxu0 0
  %765 = vmatpush1.bf16.msra.mxu0 0
  %766 = vmatprep.subr.bf16.mxu0 0
  %767 = vmatpush1.bf16.msra.mxu0 0
  %768 = vmatprep.subr.bf16.mxu0 0
  %769 = vmatpush1.bf16.msra.mxu0 0
  %770 = vmatprep.subr.bf16.mxu0 0
  %771 = vmatpush1.bf16.msra.mxu0 0
  %772 = vmatprep.subr.bf16.mxu0 0
  %773 = vmatpush1.bf16.msra.mxu0 0
  %774 = vmatprep.subr.bf16.mxu0 0
  %775 = vmatpush1.bf16.msra.mxu0 0
  %776 = vmatprep.subr.bf16.mxu0 0
  %777 = vmatpush1.bf16.msra.mxu0 %v713
  %778 = vmatprep.subr.bf16.mxu0 0
  %779 = vmatpush1.bf16.msra.mxu0 %v712
  %780 = vmatprep.subr.bf16.mxu0 0
  %781 = vmatpush2.bf16.msra.mxu0 0
  %782 = vmatprep.subr.bf16.mxu0 0
  %783 = vmatpush2.bf16.msra.mxu0 0
  %784 = vmatprep.subr.bf16.mxu0 0
  %785 = vmatpush2.bf16.msra.mxu0 0
  %786 = vmatprep.subr.bf16.mxu0 0
  %787 = vmatpush2.bf16.msra.mxu0 0
  %788 = vmatprep.subr.bf16.mxu0 0
  %789 = vmatpush2.bf16.msra.mxu0 0
  %790 = vmatprep.subr.bf16.mxu0 0
  %791 = vmatpush2.bf16.msra.mxu0 0
  %792 = vmatprep.subr.bf16.mxu0 0
  %793 = vmatpush2.bf16.msra.mxu0 0
  %794 = vmatprep.subr.bf16.mxu0 0
  %795 = vmatpush2.bf16.msra.mxu0 0
  %796 = vmatprep.mubr.bf16.mxu0 0
  %797 = vmatmul.mubr.bf16.gmra.mxu0 %v717
  %v798 = vpop.f32.mrf.mxu0
  %v799 = vadd.f32 %v702, %v798
  %v800 = vpop.f32.mrf.mxu0
  %v801 = vpop.f32.mrf.mxu0
  %v802 = vadd.f32 %v702, %v801
  %v803 = vpop.f32.mrf.mxu0
  %804 = vmatprep.mubr.bf16.mxu0 0
  %805 = vmatmul.mubr.bf16.gmra.mxu0 %v720
  %v806 = vpop.f32.mrf.mxu0
  %v807 = vadd.f32 %v702, %v806
  %v808 = vpop.f32.mrf.mxu0
  %v809 = vpop.f32.mrf.mxu0
  %v810 = vadd.f32 %v702, %v809
  %v811 = vpop.f32.mrf.mxu0
  %812 = vmatprep.mubr.bf16.mxu0 0
  %813 = vmatmul.mubr.bf16.gmra.mxu0 %v723
  %v814 = vpop.f32.mrf.mxu0
  %v815 = vadd.f32 %v702, %v814
  %v816 = vpop.f32.mrf.mxu0
  %v817 = vpop.f32.mrf.mxu0
  %v818 = vadd.f32 %v702, %v817
  %v819 = vpop.f32.mrf.mxu0
  %820 = vmatprep.mubr.bf16.mxu0 0
  %821 = vmatmul.mubr.bf16.gmra.mxu0 %v726
  %v822 = vpop.f32.mrf.mxu0
  %v823 = vadd.f32 %v702, %v822
  %v824 = vpop.f32.mrf.mxu0
  %v825 = vpop.f32.mrf.mxu0
  %v826 = vadd.f32 %v702, %v825
  %v827 = vpop.f32.mrf.mxu0
  %828 = vmatprep.mubr.bf16.mxu0 0
  %829 = vmatmul.mubr.bf16.gmra.mxu0 %v729
  %v830 = vpop.f32.mrf.mxu0
  %v831 = vadd.f32 %v702, %v830
  %v832 = vpop.f32.mrf.mxu0
  %v833 = vpop.f32.mrf.mxu0
  %v834 = vadd.f32 %v702, %v833
  %v835 = vpop.f32.mrf.mxu0
  %836 = vmatprep.mubr.bf16.mxu0 0
  %837 = vmatmul.mubr.bf16.gmra.mxu0 %v732
  %v838 = vpop.f32.mrf.mxu0
  %v839 = vadd.f32 %v702, %v838
  %v840 = vpop.f32.mrf.mxu0
  %v841 = vpop.f32.mrf.mxu0
  %v842 = vadd.f32 %v702, %v841
  %v843 = vpop.f32.mrf.mxu0
  %844 = vmatprep.mubr.bf16.mxu0 0
  %845 = vmatmul.mubr.bf16.gmra.mxu0 %v735
  %v846 = vpop.f32.mrf.mxu0
  %v847 = vadd.f32 %v702, %v846
  %v848 = vpop.f32.mrf.mxu0
  %v849 = vpop.f32.mrf.mxu0
  %v850 = vadd.f32 %v702, %v849
  %v851 = vpop.f32.mrf.mxu0
  %852 = vmatprep.mubr.bf16.mxu0 0
  %853 = vmatmul.mubr.bf16.gmra.mxu0 %v738
  %v854 = vpop.f32.mrf.mxu0
  %v855 = vadd.f32 %v702, %v854
  %v856 = vpop.f32.mrf.mxu0
  %v857 = vpop.f32.mrf.mxu0
  %v858 = vadd.f32 %v702, %v857
  %v859 = vpop.f32.mrf.mxu0
  %860 = vmatprep.mubr.bf16.mxu0 0
  %861 = vmatmul.mubr.bf16.gmra.mxu0 %v741
  %v862 = vpop.f32.mrf.mxu0
  %v863 = vadd.f32 %v702, %v862
  %v864 = vpop.f32.mrf.mxu0
  %v865 = vpop.f32.mrf.mxu0
  %v866 = vadd.f32 %v702, %v865
  %v867 = vpop.f32.mrf.mxu0
  %868 = vmatprep.mubr.bf16.mxu0 0
  %869 = vmatmul.mubr.bf16.gmra.mxu0 %v744
  %v870 = vpop.f32.mrf.mxu0
  %v871 = vadd.f32 %v702, %v870
  %v872 = vpop.f32.mrf.mxu0
  %v873 = vpop.f32.mrf.mxu0
  %v874 = vadd.f32 %v702, %v873
  %v875 = vpop.f32.mrf.mxu0
  %876 = vmatprep.mubr.bf16.mxu0 0
  %877 = vmatmul.mubr.bf16.gmra.mxu0 %v747
  %v878 = vpop.f32.mrf.mxu0
  %v879 = vadd.f32 %v702, %v878
  %v880 = vpop.f32.mrf.mxu0
  %v881 = vpop.f32.mrf.mxu0
  %v882 = vadd.f32 %v702, %v881
  %v883 = vpop.f32.mrf.mxu0
  %884 = vmatprep.mubr.bf16.mxu0 0
  %885 = vmatmul.mubr.bf16.gmra.mxu0 %v750
  %v886 = vpop.f32.mrf.mxu0
  %v887 = vadd.f32 %v702, %v886
  %v888 = vpop.f32.mrf.mxu0
  %v889 = vpop.f32.mrf.mxu0
  %v890 = vadd.f32 %v702, %v889
  %v891 = vpop.f32.mrf.mxu0
  %892 = vmatprep.mubr.bf16.mxu0 0
  %893 = vmatmul.mubr.bf16.gmra.mxu0 %v753
  %v894 = vpop.f32.mrf.mxu0
  %v895 = vadd.f32 %v702, %v894
  %v896 = vpop.f32.mrf.mxu0
  %v897 = vpop.f32.mrf.mxu0
  %v898 = vadd.f32 %v702, %v897
  %v899 = vpop.f32.mrf.mxu0
  %900 = vmatprep.mubr.bf16.mxu0 0
  %901 = vmatmul.mubr.bf16.gmra.mxu0 %v756
  %v902 = vpop.f32.mrf.mxu0
  %v903 = vadd.f32 %v702, %v902
  %v904 = vpop.f32.mrf.mxu0
  %v905 = vpop.f32.mrf.mxu0
  %v906 = vadd.f32 %v702, %v905
  %v907 = vpop.f32.mrf.mxu0
  %908 = vmatprep.mubr.bf16.mxu0 0
  %909 = vmatmul.mubr.bf16.gmra.mxu0 %v759
  %v910 = vpop.f32.mrf.mxu0
  %v911 = vadd.f32 %v702, %v910
  %v912 = vpop.f32.mrf.mxu0
  %v913 = vpop.f32.mrf.mxu0
  %v914 = vadd.f32 %v702, %v913
  %v915 = vpop.f32.mrf.mxu0
  %916 = vmatprep.mubr.bf16.mxu0 0
  %917 = vmatmul.mubr.bf16.gmra.mxu0 %v762
  %v918 = vpop.f32.mrf.mxu0
  %v919 = vadd.f32 %v702, %v918
  %v920 = vpop.f32.mrf.mxu0
  %v921 = vpop.f32.mrf.mxu0
  %v922 = vadd.f32 %v702, %v921
  %v923 = vpop.f32.mrf.mxu0
  %924 = vdwg.mxu0
  %v925 = vpack.c.bf16 %v802, %v799
  %v926 = vpack.c.bf16 %v810, %v807
  %v927 = vpack.c.bf16 %v818, %v815
  %v928 = vpack.c.bf16 %v826, %v823
  %v929 = vpack.c.bf16 %v834, %v831
  %v930 = vpack.c.bf16 %v842, %v839
  %v931 = vpack.c.bf16 %v850, %v847
  %v932 = vpack.c.bf16 %v858, %v855
  %v933 = vpack.c.bf16 %v866, %v863
  %v934 = vpack.c.bf16 %v874, %v871
  %v935 = vpack.c.bf16 %v882, %v879
  %v936 = vpack.c.bf16 %v890, %v887
  %v937 = vpack.c.bf16 %v898, %v895
  %v938 = vpack.c.bf16 %v906, %v903
  %v939 = vpack.c.bf16 %v914, %v911
  %v940 = vpack.c.bf16 %v922, %v919
  %v957 = vunpack.c.l.b16 %v925
  %v958 = vunpack.c.h.b16 %v925
  %v959 = vunpack.c.l.b16 %v926
  %v960 = vunpack.c.h.b16 %v926
  %v961 = vunpack.c.l.b16 %v927
  %v962 = vunpack.c.h.b16 %v927
  %v963 = vunpack.c.l.b16 %v928
  %v964 = vunpack.c.h.b16 %v928
  %v965 = vunpack.c.l.b16 %v929
  %v966 = vunpack.c.h.b16 %v929
  %v967 = vunpack.c.l.b16 %v930
  %v968 = vunpack.c.h.b16 %v930
  %v969 = vunpack.c.l.b16 %v931
  %v970 = vunpack.c.h.b16 %v931
  %v971 = vunpack.c.l.b16 %v932
  %v972 = vunpack.c.h.b16 %v932
  %v973 = vunpack.c.l.b16 %v933
  %v974 = vunpack.c.h.b16 %v933
  %v975 = vunpack.c.l.b16 %v934
  %v976 = vunpack.c.h.b16 %v934
  %v977 = vunpack.c.l.b16 %v935
  %v978 = vunpack.c.h.b16 %v935
  %v979 = vunpack.c.l.b16 %v936
  %v980 = vunpack.c.h.b16 %v936
  %v981 = vunpack.c.l.b16 %v937
  %v982 = vunpack.c.h.b16 %v937
  %v983 = vunpack.c.l.b16 %v938
  %v984 = vunpack.c.h.b16 %v938
  %v985 = vunpack.c.l.b16 %v939
  %v986 = vunpack.c.h.b16 %v939
  %v987 = vunpack.c.l.b16 %v940
  %v988 = vunpack.c.h.b16 %v940
  %v989 = vpack.c.b16 %v957, %v957
  %v990 = vpack.c.b16 %v958, %v958
  %v991 = vpack.c.b16 %v959, %v959
  %v992 = vpack.c.b16 %v960, %v960
  %v993 = vpack.c.b16 %v961, %v961
  %v994 = vpack.c.b16 %v962, %v962
  %v995 = vpack.c.b16 %v963, %v963
  %v996 = vpack.c.b16 %v964, %v964
  %v997 = vpack.c.b16 %v965, %v965
  %v998 = vpack.c.b16 %v966, %v966
  %v999 = vpack.c.b16 %v967, %v967
  %v1000 = vpack.c.b16 %v968, %v968
  %v1001 = vpack.c.b16 %v969, %v969
  %v1002 = vpack.c.b16 %v970, %v970
  %v1003 = vpack.c.b16 %v971, %v971
  %v1004 = vpack.c.b16 %v972, %v972
  %v1005 = vpack.c.b16 %v973, %v973
  %v1006 = vpack.c.b16 %v974, %v974
  %v1007 = vpack.c.b16 %v975, %v975
  %v1008 = vpack.c.b16 %v976, %v976
  %v1009 = vpack.c.b16 %v977, %v977
  %v1010 = vpack.c.b16 %v978, %v978
  %v1011 = vpack.c.b16 %v979, %v979
  %v1012 = vpack.c.b16 %v980, %v980
  %v1013 = vpack.c.b16 %v981, %v981
  %v1014 = vpack.c.b16 %v982, %v982
  %v1015 = vpack.c.b16 %v983, %v983
  %v1016 = vpack.c.b16 %v984, %v984
  %v1017 = vpack.c.b16 %v985, %v985
  %v1018 = vpack.c.b16 %v986, %v986
  %v1019 = vpack.c.b16 %v987, %v987
  %v1020 = vpack.c.b16 %v988, %v988
  %1053 = vst [vmem:[%s7] sm:$0xf] %v989
  %1054 = vst [vmem:[%s7 + $0x4] sm:$0xf] %v990
  %1055 = vst [vmem:[%s7 + $0x8] sm:$0xf] %v991
  %1056 = vst [vmem:[%s7 + $0xc] sm:$0xf] %v992
  %1057 = vst [vmem:[%s7 + $0x10] sm:$0xf] %v993
  %1058 = vst [vmem:[%s7 + $0x14] sm:$0xf] %v994
  %1059 = vst [vmem:[%s7 + $0x18] sm:$0xf] %v995
  %1060 = vst [vmem:[%s7 + $0x1c] sm:$0xf] %v996
  %1061 = vst [vmem:[%s7 + $0x20] sm:$0xf] %v997
  %1062 = vst [vmem:[%s7 + $0x24] sm:$0xf] %v998
  %1063 = vst [vmem:[%s7 + $0x28] sm:$0xf] %v999
  %1064 = vst [vmem:[%s7 + $0x2c] sm:$0xf] %v1000
  %1065 = vst [vmem:[%s7 + $0x30] sm:$0xf] %v1001
  %1066 = vst [vmem:[%s7 + $0x34] sm:$0xf] %v1002
  %1067 = vst [vmem:[%s7 + $0x38] sm:$0xf] %v1003
  %1068 = vst [vmem:[%s7 + $0x3c] sm:$0xf] %v1004
  %1069 = vst [vmem:[%s7 + $0x40] sm:$0xf] %v1005
  %1070 = vst [vmem:[%s7 + $0x44] sm:$0xf] %v1006
  %1071 = vst [vmem:[%s7 + $0x48] sm:$0xf] %v1007
  %1072 = vst [vmem:[%s7 + $0x4c] sm:$0xf] %v1008
  %1073 = vst [vmem:[%s7 + $0x50] sm:$0xf] %v1009
  %1074 = vst [vmem:[%s7 + $0x54] sm:$0xf] %v1010
  %1075 = vst [vmem:[%s7 + $0x58] sm:$0xf] %v1011
  %1076 = vst [vmem:[%s7 + $0x5c] sm:$0xf] %v1012
  %1077 = vst [vmem:[%s7 + $0x60] sm:$0xf] %v1013
  %1078 = vst [vmem:[%s7 + $0x64] sm:$0xf] %v1014
  %1079 = vst [vmem:[%s7 + $0x68] sm:$0xf] %v1015
  %1080 = vst [vmem:[%s7 + $0x6c] sm:$0xf] %v1016
  %1081 = vst [vmem:[%s7 + $0x70] sm:$0xf] %v1017
  %1082 = vst [vmem:[%s7 + $0x74] sm:$0xf] %v1018
  %1083 = vst [vmem:[%s7 + $0x78] sm:$0xf] %v1019
  %1084 = vst [vmem:[%s7 + $0x7c] sm:$0xf] %v1020
  // Predicated region
  $region30: #{policy_forward.1} parent=0 // pred_check
    _
  $region31: #{policy_forward.1} parent=0 // pred_check_branch
    %1086 = sbr.rel (0) target = $region33
  $region32: #{policy_forward.1} parent=0 // pred_region
    _
  $region33: #{policy_forward.1} parent=0 // pred_fallthru
    _
  // Predicated region
  $region34: #{policy_forward.1} parent=0 // pred_check
    _
  $region35: #{policy_forward.1} parent=0 // pred_check_branch
    %1088 = sbr.rel (0) target = $region37
  $region36: #{policy_forward.1} parent=0 // pred_region
    _
  $region37: #{policy_forward.1} parent=0 // pred_fallthru
    _

</llo_original>
